<compile_context>
chip_gen: v6e
topology: v6e:2x2x1
jax: 0.10.0
libtpu: 0.0.40
codegen_flags: <defaults>
</compile_context>

<pallas_src>
import functools

import jax
import jax.numpy as jnp
from jax.experimental import pallas as pl
from jax.experimental.pallas import tpu as pltpu


def _round_up(x, n):
    return ((x + n - 1) // n) * n


def _tpu_defaults():
    """Generation-aware (row-tile, VMEM-limit-ceiling-bytes) defaults."""
    kind = ""
    try:
        kind = jax.devices()[0].device_kind.lower()
    except Exception:
        pass
    if "v7" in kind:      # 64 MiB VMEM per TensorCore, 2 TCs/chip
        tm, cap = 256, 48 * 1024 * 1024
    elif "v6" in kind:    # 128 MiB VMEM, large MXU -> bigger row tiles pay off
        tm, cap = 512, 100 * 1024 * 1024
    elif "v5" in kind:    # 128 MiB VMEM, 4x128^2 MXU / f32-heavy VPU
        tm, cap = 256, 100 * 1024 * 1024
    else:                 # unknown generation: conservative
        tm, cap = 256, 48 * 1024 * 1024
    try:  # refine the ceiling from the actual chip when the query is available
        cap = min(cap, int(0.78 * pltpu.get_tpu_info().vmem_capacity_bytes))
    except Exception:
        pass
    return tm, max(cap, 16 * 1024 * 1024)


def _mlp_classifier_kernel(x_ref, w1_ref, b1_ref, w2_ref, b2_ref, o_ref, *,
                           approximate_gelu):
    # Two MXU matmuls (f32 accumulation) fused with GELU in VMEM.  Activation
    # tile is cast to the weight compute dtype (bf16 by default) in VMEM so the
    # MXU runs at bf16 peak without an extra HBM pass over x.  Bias adds use
    # implicit (1, N) broadcasting (no broadcast_to in the body).
    x = x_ref[...].astype(w1_ref.dtype)
    h = jnp.dot(x, w1_ref[...], preferred_element_type=jnp.float32) + b1_ref[...]
    # tanh GELU lowers to the EUP slot (free under MXU); erf is a VALU polynomial.
    h = jax.nn.gelu(h, approximate=approximate_gelu)
    # TODO(synk): training-mode dropout (stateful RNG mask) omitted; eval-mode identity.
    out = jnp.dot(h.astype(w2_ref.dtype), w2_ref[...],
                  preferred_element_type=jnp.float32) + b2_ref[...]
    o_ref[...] = out.astype(o_ref.dtype)


def prepare_classifier_params(w1, b1, w2, b2, *, compute_dtype=jnp.bfloat16):
    """One-time parameter prep (hoisted out of the per-call path):
    pad num_label up to a multiple of 128 lanes (lane-dense output stores) and
    cast the weight matrices to the MXU compute dtype.  Biases stay f32 (added
    to the f32 accumulator)."""
    hidden = w1.shape[0]
    num_label = w2.shape[1]
    n_pad = _round_up(num_label, 128)
    if n_pad != num_label:
        w2 = jnp.pad(w2, ((0, 0), (0, n_pad - num_label)))
        b2 = jnp.pad(b2, ((0, n_pad - num_label),))
    return dict(
        w1=w1.astype(compute_dtype),
        b1=b1.reshape(1, hidden).astype(jnp.float32),
        w2=w2.astype(compute_dtype),
        b2=b2.reshape(1, n_pad).astype(jnp.float32),
        hidden=hidden,
        num_label=num_label,
        n_pad=n_pad,
    )


def multi_nonlinear_classifier(x, params, *, tm=None, approximate_gelu=True):
    """x: (..., hidden); params from prepare_classifier_params().
    Returns (..., num_label)."""
    hidden = params["hidden"]
    num_label = params["num_label"]
    n_pad = params["n_pad"]
    w1, b1, w2, b2 = params["w1"], params["b1"], params["w2"], params["b2"]

    orig_shape = x.shape
    assert orig_shape[-1] == hidden
    x2d = x.reshape(-1, hidden)
    m = x2d.shape[0]

    tm_default, vmem_cap = _tpu_defaults()
    tm = tm_default if tm is None else tm

    # Row tile: no M padding.  For m >= tm the last block is partial and Pallas
    # masks it (rows are independent -> garbage rows are discarded harmlessly).
    # For small m use a full-extent block (block == array dim is always legal,
    # avoids the 8-row bf16 packing cliff).
    tm_eff = tm if m >= tm else m
    # v7x megacore: avoid a 1-tile grid when there is enough work for 2 cores
    # (on single-TC chips this only adds one ~0.35us grid step).
    if pl.cdiv(m, tm_eff) == 1 and m >= 256:
        tm_eff = _round_up(pl.cdiv(m, 2), 128)
    grid = (pl.cdiv(m, tm_eff),)

    w_itemsize = jnp.dtype(w1.dtype).itemsize
    x_itemsize = jnp.dtype(x.dtype).itemsize
    weight_bytes = ((hidden * hidden + hidden * n_pad) * w_itemsize
                    + (hidden + n_pad) * 4)

    # TODO(synk): for very large hidden (resident weights > ~60% of per-TC
    # VMEM, earliest on v7x's 64 MiB), add a K-tiled grid axis ("arbitrary")
    # with an f32 VMEM accumulator instead of keeping W1/W2 fully resident.
    def _vmem_limit(weight_copies):
        tiles = 2 * tm_eff * (hidden + n_pad) * x_itemsize   # double-buffered x/out
        inter = tm_eff * (hidden + n_pad) * 4                # f32 intermediates
        est = weight_copies * weight_bytes + tiles + inter
        return int(min(max(2 * est, 16 * 1024 * 1024), vmem_cap))

    cost = pl.CostEstimate(
        flops=2 * m * hidden * (hidden + n_pad),
        transcendentals=m * hidden,
        bytes_accessed=(m * hidden * x_itemsize + weight_bytes
                        + m * n_pad * x_itemsize),
    )

    kernel = functools.partial(_mlp_classifier_kernel,
                               approximate_gelu=approximate_gelu)

    def _run(weight_mode, weight_copies):
        def wspec(shape):
            # Grid-invariant operands: constant index_map => fetched once;
            # weight_mode=pl.Buffered(1) also drops the unused second buffer.
            return pl.BlockSpec(shape, lambda i: (0, 0), pipeline_mode=weight_mode)

        return pl.pallas_call(
            kernel,
            out_shape=jax.ShapeDtypeStruct((m, n_pad), x.dtype),
            grid_spec=pltpu.PrefetchScalarGridSpec(
                num_scalar_prefetch=0,
                grid=grid,
                in_specs=[
                    pl.BlockSpec((tm_eff, hidden), lambda i: (i, 0)),  # x row tile
                    wspec((hidden, hidden)),                            # W1 (resident)
                    wspec((1, hidden)),                                 # b1
                    wspec((hidden, n_pad)),                             # W2 (resident)
                    wspec((1, n_pad)),                                  # b2
                ],
                out_specs=pl.BlockSpec((tm_eff, n_pad), lambda i: (i, 0)),
            ),
            compiler_params=pltpu.CompilerParams(
                dimension_semantics=("parallel",),  # rows split across TCs (v7x)
                vmem_limit_bytes=_vmem_limit(weight_copies),
            ),
            cost_estimate=cost,
        )(x2d, w1, b1, w2, b2)

    try:
        out = _run(pl.Buffered(1), 1)
    except Exception:
        # Fallback differs ONLY in pipeline_mode; any genuine kernel error will
        # re-raise from this path (nothing is silently swallowed).  The VMEM
        # budget here accounts for the duplicated weight buffers (2x).
        out = _run(None, 2)

    out = out[:, :num_label]   # drop the lane padding
    return out.reshape(*orig_shape[:-1], num_label)


if __name__ == "__main__":
    batch, seq, hidden, num_label = 2, 8, 32, 8
    dropout_rate = 0.1  # unused at inference (nn.Dropout is the identity in eval)

    key = jax.random.PRNGKey(0)
    kx, kw1, kb1, kw2, kb2 = jax.random.split(key, 5)

    x = jax.random.normal(kx, (batch, seq, hidden), dtype=jnp.float32)
    # Deterministic synthetic parameters (shapes from nn.Linear), stored (in, out).
    w1 = jax.random.normal(kw1, (hidden, hidden), dtype=jnp.float32) * 0.05
    b1 = jax.random.normal(kb1, (hidden,), dtype=jnp.float32) * 0.05
    w2 = jax.random.normal(kw2, (hidden, num_label), dtype=jnp.float32) * 0.05
    b2 = jax.random.normal(kb2, (num_label,), dtype=jnp.float32) * 0.05

    # ---- default (fast) config: bf16 MXU compute + tanh GELU ---------------
    params_fast = prepare_classifier_params(w1, b1, w2, b2,
                                            compute_dtype=jnp.bfloat16)
    out_fast = jax.block_until_ready(multi_nonlinear_classifier(x, params_fast))
    assert out_fast.shape == (batch, seq, num_label)

    # Kernel-fidelity reference: identical casts + tanh GELU in plain JAX.
    cd = jnp.bfloat16
    h_ref = jnp.dot(x.astype(cd), w1.astype(cd),
                    preferred_element_type=jnp.float32) + b1
    h_ref = jax.nn.gelu(h_ref, approximate=True)
    ref_fast = (jnp.dot(h_ref.astype(cd), w2.astype(cd),
                        preferred_element_type=jnp.float32) + b2).astype(x.dtype)
    assert jnp.allclose(out_fast, ref_fast, atol=2e-3, rtol=2e-3)

    # Loose check against the torch-equivalent math (erf GELU, f32): the gap is
    # the intentional bf16 + tanh-GELU perf tradeoff.
    ref_exact = jnp.dot(jax.nn.gelu(jnp.dot(x, w1) + b1, approximate=False), w2) + b2
    assert jnp.allclose(out_fast, ref_exact, atol=5e-2, rtol=0)

    # ---- exact config: f32 compute + erf GELU (torch F.gelu default) -------
    params_exact = prepare_classifier_params(w1, b1, w2, b2,
                                             compute_dtype=jnp.float32)
    out_exact = jax.block_until_ready(
        multi_nonlinear_classifier(x, params_exact, approximate_gelu=False))
    assert jnp.allclose(out_exact, ref_exact, atol=1e-5, rtol=1e-5)

    print("KERNEL_OK")
</pallas_src>

<mosaic_0001>
module attributes {stable_mosaic.version = 11 : i64} {
  func.func @_mlp_classifier_kernel(%arg0: i32, %arg1: memref<16x32xf32, #tpu.memory_space<vmem>>, %arg2: memref<32x32xbf16, #tpu.memory_space<vmem>>, %arg3: memref<1x32xf32, #tpu.memory_space<vmem>>, %arg4: memref<32x128xbf16, #tpu.memory_space<vmem>>, %arg5: memref<1x128xf32, #tpu.memory_space<vmem>>, %arg6: memref<16x128xf32, #tpu.memory_space<vmem>>) attributes {dimension_semantics = [#tpu.dimension_semantics<parallel>], iteration_bounds = array<i64: 1>, scalar_prefetch = 0 : i64, scratch_operands = 0 : i64, tpu.core_type = #tpu.core_type<tc>, window_params = [{transform_indices = @transform_0, window_bounds = array<i64: 16, 32>}, {pipeline_mode = #tpu.pipeline_mode<synchronous>, transform_indices = @transform_1, window_bounds = array<i64: 32, 32>}, {pipeline_mode = #tpu.pipeline_mode<synchronous>, transform_indices = @transform_2, window_bounds = array<i64: 1, 32>}, {pipeline_mode = #tpu.pipeline_mode<synchronous>, transform_indices = @transform_3, window_bounds = array<i64: 32, 128>}, {pipeline_mode = #tpu.pipeline_mode<synchronous>, transform_indices = @transform_4, window_bounds = array<i64: 1, 128>}, {transform_indices = @transform_5, window_bounds = array<i64: 16, 128>}]} {
    %c0 = arith.constant 0 : index
    %c0_0 = arith.constant 0 : index
    %0 = vector.load %arg1[%c0, %c0_0] : memref<16x32xf32, #tpu.memory_space<vmem>>, vector<16x32xf32>
    %1 = arith.truncf %0 : vector<16x32xf32> to vector<16x32xbf16>
    %c0_1 = arith.constant 0 : index
    %c0_2 = arith.constant 0 : index
    %2 = vector.load %arg2[%c0_1, %c0_2] : memref<32x32xbf16, #tpu.memory_space<vmem>>, vector<32x32xbf16>
    %cst = arith.constant dense<0.000000e+00> : vector<16x32xf32>
    %3 = tpu.matmul %1, %2, %cst {dimension_numbers = #tpu.dot_dimension_numbers<[1], [0], [0], [1], [0, 0, 1, 1], [], []>} : vector<16x32xbf16>, vector<32x32xbf16>, vector<16x32xf32> -> vector<16x32xf32>
    %c0_3 = arith.constant 0 : index
    %c0_4 = arith.constant 0 : index
    %4 = vector.load %arg3[%c0_3, %c0_4] : memref<1x32xf32, #tpu.memory_space<vmem>>, vector<1x32xf32>
    %5 = vector.broadcast %4 : vector<1x32xf32> to vector<16x32xf32>
    %6 = arith.addf %3, %5 : vector<16x32xf32>
    %7 = arith.mulf %6, %6 : vector<16x32xf32>
    %8 = arith.mulf %6, %7 : vector<16x32xf32>
    %cst_5 = arith.constant 4.471500e-02 : f32
    %9 = vector.broadcast %cst_5 : f32 to vector<16x32xf32>
    %10 = arith.mulf %9, %8 : vector<16x32xf32>
    %11 = arith.addf %6, %10 : vector<16x32xf32>
    %cst_6 = arith.constant 0.797884583 : f32
    %12 = vector.broadcast %cst_6 : f32 to vector<16x32xf32>
    %13 = arith.mulf %12, %11 : vector<16x32xf32>
    %14 = math.tanh %13 : vector<16x32xf32>
    %cst_7 = arith.constant 1.000000e+00 : f32
    %15 = vector.broadcast %cst_7 : f32 to vector<16x32xf32>
    %16 = arith.addf %15, %14 : vector<16x32xf32>
    %cst_8 = arith.constant 5.000000e-01 : f32
    %17 = vector.broadcast %cst_8 : f32 to vector<16x32xf32>
    %18 = arith.mulf %17, %16 : vector<16x32xf32>
    %19 = arith.mulf %6, %18 : vector<16x32xf32>
    %20 = arith.truncf %19 : vector<16x32xf32> to vector<16x32xbf16>
    %c0_9 = arith.constant 0 : index
    %c0_10 = arith.constant 0 : index
    %21 = vector.load %arg4[%c0_9, %c0_10] : memref<32x128xbf16, #tpu.memory_space<vmem>>, vector<32x128xbf16>
    %cst_11 = arith.constant dense<0.000000e+00> : vector<16x128xf32>
    %22 = tpu.matmul %20, %21, %cst_11 {dimension_numbers = #tpu.dot_dimension_numbers<[1], [0], [0], [1], [0, 0, 1, 1], [], []>} : vector<16x32xbf16>, vector<32x128xbf16>, vector<16x128xf32> -> vector<16x128xf32>
    %c0_12 = arith.constant 0 : index
    %c0_13 = arith.constant 0 : index
    %23 = vector.load %arg5[%c0_12, %c0_13] : memref<1x128xf32, #tpu.memory_space<vmem>>, vector<1x128xf32>
    %24 = vector.broadcast %23 : vector<1x128xf32> to vector<16x128xf32>
    %25 = arith.addf %22, %24 : vector<16x128xf32>
    %c0_14 = arith.constant 0 : index
    %c0_15 = arith.constant 0 : index
    %26 = vector.load %arg6[%c0_14, %c0_15] : memref<16x128xf32, #tpu.memory_space<vmem>>, vector<16x128xf32>
    tpu.vector_store %arg6[%c0_14, %c0_15], %25 {strides = array<i32>} : memref<16x128xf32, #tpu.memory_space<vmem>>, vector<16x128xf32>,
    return
  }
  func.func @transform_0(%arg0: i32) -> (i32, i32) {
    %c0_i32 = arith.constant 0 : i32
    %c0_i32_0 = arith.constant 0 : i32
    return %arg0, %c0_i32 : i32, i32
  }
  func.func @transform_1(%arg0: i32) -> (i32, i32) {
    %c0_i32 = arith.constant 0 : i32
    %c0_i32_0 = arith.constant 0 : i32
    %c0_i32_1 = arith.constant 0 : i32
    return %c0_i32, %c0_i32_0 : i32, i32
  }
  func.func @transform_2(%arg0: i32) -> (i32, i32) {
    %c0_i32 = arith.constant 0 : i32
    %c0_i32_0 = arith.constant 0 : i32
    %c0_i32_1 = arith.constant 0 : i32
    return %c0_i32, %c0_i32_0 : i32, i32
  }
  func.func @transform_3(%arg0: i32) -> (i32, i32) {
    %c0_i32 = arith.constant 0 : i32
    %c0_i32_0 = arith.constant 0 : i32
    %c0_i32_1 = arith.constant 0 : i32
    return %c0_i32, %c0_i32_0 : i32, i32
  }
  func.func @transform_4(%arg0: i32) -> (i32, i32) {
    %c0_i32 = arith.constant 0 : i32
    %c0_i32_0 = arith.constant 0 : i32
    %c0_i32_1 = arith.constant 0 : i32
    return %c0_i32, %c0_i32_0 : i32, i32
  }
  func.func @transform_5(%arg0: i32) -> (i32, i32) {
    %c0_i32 = arith.constant 0 : i32
    %c0_i32_0 = arith.constant 0 : i32
    return %arg0, %c0_i32 : i32, i32
  }
}

module attributes {stable_mosaic.version = 11 : i64} {
  func.func @_mlp_classifier_kernel(%arg0: i32, %arg1: memref<16x32xf32, #tpu.memory_space<vmem>>, %arg2: memref<32x32xbf16, #tpu.memory_space<vmem>>, %arg3: memref<1x32xf32, #tpu.memory_space<vmem>>, %arg4: memref<32x128xbf16, #tpu.memory_space<vmem>>, %arg5: memref<1x128xf32, #tpu.memory_space<vmem>>, %arg6: memref<16x128xf32, #tpu.memory_space<vmem>>) attributes {dimension_semantics = [#tpu.dimension_semantics<parallel>], iteration_bounds = array<i64: 1>, scalar_prefetch = 0 : i64, scratch_operands = 0 : i64, tpu.core_type = #tpu.core_type<tc>, window_params = [{transform_indices = @transform_0, window_bounds = array<i64: 16, 32>}, {pipeline_mode = #tpu.pipeline_mode<synchronous>, transform_indices = @transform_1, window_bounds = array<i64: 32, 32>}, {pipeline_mode = #tpu.pipeline_mode<synchronous>, transform_indices = @transform_2, window_bounds = array<i64: 1, 32>}, {pipeline_mode = #tpu.pipeline_mode<synchronous>, transform_indices = @transform_3, window_bounds = array<i64: 32, 128>}, {pipeline_mode = #tpu.pipeline_mode<synchronous>, transform_indices = @transform_4, window_bounds = array<i64: 1, 128>}, {transform_indices = @transform_5, window_bounds = array<i64: 16, 128>}]} {
    %c0 = arith.constant 0 : index
    %c0_0 = arith.constant 0 : index
    %0 = vector.load %arg1[%c0, %c0_0] : memref<16x32xf32, #tpu.memory_space<vmem>>, vector<16x32xf32>
    %1 = arith.truncf %0 : vector<16x32xf32> to vector<16x32xbf16>
    %c0_1 = arith.constant 0 : index
    %c0_2 = arith.constant 0 : index
    %2 = vector.load %arg2[%c0_1, %c0_2] : memref<32x32xbf16, #tpu.memory_space<vmem>>, vector<32x32xbf16>
    %cst = arith.constant dense<0.000000e+00> : vector<16x32xf32>
    %3 = tpu.matmul %1, %2, %cst {dimension_numbers = #tpu.dot_dimension_numbers<[1], [0], [0], [1], [0, 0, 1, 1], [], []>} : vector<16x32xbf16>, vector<32x32xbf16>, vector<16x32xf32> -> vector<16x32xf32>
    %c0_3 = arith.constant 0 : index
    %c0_4 = arith.constant 0 : index
    %4 = vector.load %arg3[%c0_3, %c0_4] : memref<1x32xf32, #tpu.memory_space<vmem>>, vector<1x32xf32>
    %5 = vector.broadcast %4 : vector<1x32xf32> to vector<16x32xf32>
    %6 = arith.addf %3, %5 : vector<16x32xf32>
    %7 = arith.mulf %6, %6 : vector<16x32xf32>
    %8 = arith.mulf %6, %7 : vector<16x32xf32>
    %cst_5 = arith.constant 4.471500e-02 : f32
    %9 = vector.broadcast %cst_5 : f32 to vector<16x32xf32>
    %10 = arith.mulf %9, %8 : vector<16x32xf32>
    %11 = arith.addf %6, %10 : vector<16x32xf32>
    %cst_6 = arith.constant 0.797884583 : f32
    %12 = vector.broadcast %cst_6 : f32 to vector<16x32xf32>
    %13 = arith.mulf %12, %11 : vector<16x32xf32>
    %14 = math.tanh %13 : vector<16x32xf32>
    %cst_7 = arith.constant 1.000000e+00 : f32
    %15 = vector.broadcast %cst_7 : f32 to vector<16x32xf32>
    %16 = arith.addf %15, %14 : vector<16x32xf32>
    %cst_8 = arith.constant 5.000000e-01 : f32
    %17 = vector.broadcast %cst_8 : f32 to vector<16x32xf32>
    %18 = arith.mulf %17, %16 : vector<16x32xf32>
    %19 = arith.mulf %6, %18 : vector<16x32xf32>
    %20 = arith.truncf %19 : vector<16x32xf32> to vector<16x32xbf16>
    %c0_9 = arith.constant 0 : index
    %c0_10 = arith.constant 0 : index
    %21 = vector.load %arg4[%c0_9, %c0_10] : memref<32x128xbf16, #tpu.memory_space<vmem>>, vector<32x128xbf16>
    %cst_11 = arith.constant dense<0.000000e+00> : vector<16x128xf32>
    %22 = tpu.matmul %20, %21, %cst_11 {dimension_numbers = #tpu.dot_dimension_numbers<[1], [0], [0], [1], [0, 0, 1, 1], [], []>} : vector<16x32xbf16>, vector<32x128xbf16>, vector<16x128xf32> -> vector<16x128xf32>
    %c0_12 = arith.constant 0 : index
    %c0_13 = arith.constant 0 : index
    %23 = vector.load %arg5[%c0_12, %c0_13] : memref<1x128xf32, #tpu.memory_space<vmem>>, vector<1x128xf32>
    %24 = vector.broadcast %23 : vector<1x128xf32> to vector<16x128xf32>
    %25 = arith.addf %22, %24 : vector<16x128xf32>
    %c0_14 = arith.constant 0 : index
    %c0_15 = arith.constant 0 : index
    %26 = vector.load %arg6[%c0_14, %c0_15] : memref<16x128xf32, #tpu.memory_space<vmem>>, vector<16x128xf32>
    tpu.vector_store %arg6[%c0_14, %c0_15], %25 {strides = array<i32>} : memref<16x128xf32, #tpu.memory_space<vmem>>, vector<16x128xf32>,
    return
  }
  func.func @transform_0(%arg0: i32) -> (i32, i32) {
    %c0_i32 = arith.constant 0 : i32
    %c0_i32_0 = arith.constant 0 : i32
    return %arg0, %c0_i32 : i32, i32
  }
  func.func @transform_1(%arg0: i32) -> (i32, i32) {
    %c0_i32 = arith.constant 0 : i32
    %c0_i32_0 = arith.constant 0 : i32
    %c0_i32_1 = arith.constant 0 : i32
    return %c0_i32, %c0_i32_0 : i32, i32
  }
  func.func @transform_2(%arg0: i32) -> (i32, i32) {
    %c0_i32 = arith.constant 0 : i32
    %c0_i32_0 = arith.constant 0 : i32
    %c0_i32_1 = arith.constant 0 : i32
    return %c0_i32, %c0_i32_0 : i32, i32
  }
  func.func @transform_3(%arg0: i32) -> (i32, i32) {
    %c0_i32 = arith.constant 0 : i32
    %c0_i32_0 = arith.constant 0 : i32
    %c0_i32_1 = arith.constant 0 : i32
    return %c0_i32, %c0_i32_0 : i32, i32
  }
  func.func @transform_4(%arg0: i32) -> (i32, i32) {
    %c0_i32 = arith.constant 0 : i32
    %c0_i32_0 = arith.constant 0 : i32
    %c0_i32_1 = arith.constant 0 : i32
    return %c0_i32, %c0_i32_0 : i32, i32
  }
  func.func @transform_5(%arg0: i32) -> (i32, i32) {
    %c0_i32 = arith.constant 0 : i32
    %c0_i32_0 = arith.constant 0 : i32
    return %arg0, %c0_i32 : i32, i32
  }
}

</mosaic_0001>

<llo_original>
// kernel: tpu_custom_call.1
$region0: #{tpu_custom_call.1}
  #allocation0 [shape = 'u32[]', space=smem, size = 0x4, offset = 0x4, fixed_abs, tag = 'smem constant byte address 0x4 - core index']
  #allocation1 [shape = 'u32[144,128]{1,0:T(1,128)}', space=vmem, size = 0x12000, scoped, tag = 'internal scratch']
  %s0 = inlined_call_operand.hbm [shape: f32[16,32], index: 0, kind: input, shape index: {}]
  %s1 = inlined_call_operand.hbm [shape: bf16[32,32], index: 1, kind: input, shape index: {}]
  %s2 = inlined_call_operand.vmem [shape: f32[1,32], index: 2, kind: input, shape index: {}]
  %s3 = inlined_call_operand.hbm [shape: bf16[32,128], index: 3, kind: input, shape index: {}]
  %s4 = inlined_call_operand.vmem [shape: f32[1,128], index: 4, kind: input, shape index: {}]
  %s5 = inlined_call_operand.hbm [shape: f32[16,128], index: 5, kind: output, shape index: {}]
  %s6 = sld [smem:[#allocation0]]
  $region42: #{tpu_custom_call.1} parent=0
    _
  %s8 = ssub.s32 1, %s6
  %s9 = scalar_select 0, %s8, %s6
  $region1: #{tpu_custom_call.1} parent=0
    #allocation2 [shape = 'u8[8192]{0}', space=vmem, size = 0x2000, scoped, tag = 'input window, operand 0, single buffered']
    #allocation3 [shape = 's32[1]{0}', space=sflag, size = 0x4, scoped, tag = 'scoped memory for tpu_custom_call.1']
    #allocation4 [shape = 's32[1]{0}', space=sflag, size = 0x4, scoped, tag = 'scoped memory for tpu_custom_call.1']
    #allocation5 [shape = 'u8[8192]{0}', space=vmem, size = 0x2000, scoped, tag = 'input window, operand 1, single buffered']
    #allocation6 [shape = 's32[1]{0}', space=sflag, size = 0x4, scoped, tag = 'scoped memory for tpu_custom_call.1']
    #allocation7 [shape = 'u8[8192]{0}', space=vmem, size = 0x2000, scoped, tag = 'input window, operand 3, single buffered']
    #allocation8 [shape = 'u8[8192]{0}', space=vmem, size = 0x2000, scoped, tag = 'output window, operand 0, single buffered']
    %10 = vsyncpa [#allocation3], 0
    %11 = vsyncpa [#allocation6], 0
    %12 = vsyncpa [#allocation4], 0
    // Predicated region
    $region2: #{tpu_custom_call.1} parent=1 // pred_check
      _
    $region3: #{tpu_custom_call.1} parent=1 // pred_check_branch
      %14 = sbr.rel (0) target = $region5
    $region4: #{tpu_custom_call.1} parent=1 // pred_region
      %s16 = ssub.s32 256, 256
      %17 = vsyncadd [#allocation3], %s16
      %s18 = sshll.u32 [#allocation2], 4
      %s19 = int_to_ptr.vmem [resolvable:$true] %s18
      %24 = dma.hbm_to_vmem [thread:$0]  %s0, 256, %s19, [#allocation3], 128, 128, 8
    $region5: #{tpu_custom_call.1} parent=1 // pred_fallthru
      _
    // Predicated region
    $region6: #{tpu_custom_call.1} parent=1 // pred_check
      _
    $region7: #{tpu_custom_call.1} parent=1 // pred_check_branch
      %26 = sbr.rel (0) target = $region9
    $region8: #{tpu_custom_call.1} parent=1 // pred_region
      %s28 = ssub.s32 256, 256
      %29 = vsyncadd [#allocation6], %s28
      %s30 = sshll.u32 [#allocation5], 4
      %s31 = int_to_ptr.vmem [resolvable:$true] %s30
      %36 = dma.hbm_to_vmem [thread:$0]  %s1, 256, %s31, [#allocation6], 64, 64, 4
    $region9: #{tpu_custom_call.1} parent=1 // pred_fallthru
      _
    // Predicated region
    $region10: #{tpu_custom_call.1} parent=1 // pred_check
      _
    $region11: #{tpu_custom_call.1} parent=1 // pred_check_branch
      %38 = sbr.rel (0) target = $region13
    $region12: #{tpu_custom_call.1} parent=1 // pred_region
      _
    $region13: #{tpu_custom_call.1} parent=1 // pred_fallthru
      _
    // Predicated region
    $region14: #{tpu_custom_call.1} parent=1 // pred_check
      _
    $region15: #{tpu_custom_call.1} parent=1 // pred_check_branch
      %40 = sbr.rel (0) target = $region17
    $region16: #{tpu_custom_call.1} parent=1 // pred_region
      %s42 = ssub.s32 256, 256
      %43 = vsyncadd [#allocation6], %s42
      %s44 = sshll.u32 [#allocation7], 4
      %s45 = int_to_ptr.vmem [resolvable:$true] %s44
      %50 = dma.hbm_to_vmem [thread:$0]  %s3, 256, %s45, [#allocation6], 64, 64, 4
    $region17: #{tpu_custom_call.1} parent=1 // pred_fallthru
      _
    // Predicated region
    $region18: #{tpu_custom_call.1} parent=1 // pred_check
      _
    $region19: #{tpu_custom_call.1} parent=1 // pred_check_branch
      %52 = sbr.rel (0) target = $region21
    $region20: #{tpu_custom_call.1} parent=1 // pred_region
      _
    $region21: #{tpu_custom_call.1} parent=1 // pred_fallthru
      _
    // Predicated region
    $region22: #{tpu_custom_call.1} parent=1 // pred_check
      _
    $region23: #{tpu_custom_call.1} parent=1 // pred_check_branch
      %54 = sbr.rel (0) target = $region25
    $region24: #{tpu_custom_call.1} parent=1 // pred_region
      %55 = dma.done [#allocation3], 256
    $region25: #{tpu_custom_call.1} parent=1 // pred_fallthru
      _
    // Predicated region
    $region26: #{tpu_custom_call.1} parent=1 // pred_check
      _
    $region27: #{tpu_custom_call.1} parent=1 // pred_check_branch
      %57 = sbr.rel (0) target = $region29
    $region28: #{tpu_custom_call.1} parent=1 // pred_region
      %58 = dma.done [#allocation6], 256
    $region29: #{tpu_custom_call.1} parent=1 // pred_fallthru
      _
    // Predicated region
    $region30: #{tpu_custom_call.1} parent=1 // pred_check
      _
    $region31: #{tpu_custom_call.1} parent=1 // pred_check_branch
      %60 = sbr.rel (0) target = $region33
    $region32: #{tpu_custom_call.1} parent=1 // pred_region
      %61 = dma.done [#allocation6], 256
    $region33: #{tpu_custom_call.1} parent=1 // pred_fallthru
      _
    %v63 = vld [vmem:[#allocation2] sm:$0xff]
    %v64 = vld [vmem:[#allocation2 + $0x8] sm:$0xff]
    %v65 = vpack.c.bf16 %v64, %v63
    %v66 = vld [vmem:[#allocation5] sm:$0xf]
    %v67 = vld [vmem:[#allocation5 + $0x4] sm:$0xf]
    %v68 = vld [vmem:[#allocation5 + $0x8] sm:$0xf]
    %v69 = vld [vmem:[#allocation5 + $0xc] sm:$0xf]
    %v70 = vld [vmem:[%s2] sm:$0x1]
    %v72 = vlaneseq
    %v73 = vshrl.u32 %v72, 7
    %v74 = vsub.s32 0, %v73
    %v75 = vrot.slane %v70, %v74
    %v81 = vunpack.c.l.b16 %v66
    %v82 = vunpack.c.l.b16 %v67
    %v83 = vunpack.c.l.b16 %v68
    %v84 = vunpack.c.l.b16 %v69
    %v85 = vpack.c.b16 %v82, %v81
    %v86 = vpack.c.b16 %v84, %v83
    %vm89 = vcmask 261120
    %v91 = vsel %vm89, %v65, 0
    %93 = vmatprep.subr.bf16.mxu0 0
    %94 = vmatpush1.bf16.msra.mxu0 0
    %95 = vmatprep.subr.bf16.mxu0 0
    %96 = vmatpush1.bf16.msra.mxu0 0
    %97 = vmatprep.subr.bf16.mxu0 0
    %98 = vmatpush1.bf16.msra.mxu0 0
    %99 = vmatprep.subr.bf16.mxu0 0
    %100 = vmatpush1.bf16.msra.mxu0 0
    %101 = vmatprep.subr.bf16.mxu0 0
    %102 = vmatpush1.bf16.msra.mxu0 0
    %103 = vmatprep.subr.bf16.mxu0 0
    %104 = vmatpush1.bf16.msra.mxu0 0
    %105 = vmatprep.subr.bf16.mxu0 0
    %106 = vmatpush1.bf16.msra.mxu0 %v86
    %107 = vmatprep.subr.bf16.mxu0 0
    %108 = vmatpush1.bf16.msra.mxu0 %v85
    %109 = vmatprep.subr.bf16.mxu0 0
    %110 = vmatpush2.bf16.msra.mxu0 0
    %111 = vmatprep.subr.bf16.mxu0 0
    %112 = vmatpush2.bf16.msra.mxu0 0
    %113 = vmatprep.subr.bf16.mxu0 0
    %114 = vmatpush2.bf16.msra.mxu0 0
    %115 = vmatprep.subr.bf16.mxu0 0
    %116 = vmatpush2.bf16.msra.mxu0 0
    %117 = vmatprep.subr.bf16.mxu0 0
    %118 = vmatpush2.bf16.msra.mxu0 0
    %119 = vmatprep.subr.bf16.mxu0 0
    %120 = vmatpush2.bf16.msra.mxu0 0
    %121 = vmatprep.subr.bf16.mxu0 0
    %122 = vmatpush2.bf16.msra.mxu0 0
    %123 = vmatprep.subr.bf16.mxu0 0
    %124 = vmatpush2.bf16.msra.mxu0 0
    %125 = vmatprep.mubr.bf16.mxu0 0
    %126 = vmatmul.mubr.bf16.gmra.mxu0 %v91
    %v127 = vpop.f32.mrf.mxu0
    %v128 = vadd.f32 %v75, %v127
    %v129 = vpop.f32.mrf.mxu0
    %v130 = vpop.f32.mrf.mxu0
    %v131 = vadd.f32 %v75, %v130
    %v132 = vpop.f32.mrf.mxu0
    %133 = vdwg.mxu0
    %v134 = vmul.f32 %v128, %v128
    %v135 = vmul.f32 %v131, %v131
    %v136 = vmul.f32 %v128, %v134
    %v137 = vmul.f32 %v131, %v135
    %v138 = vmul.f32 %v136, 0.044715
    %v139 = vmul.f32 %v137, 0.044715
    %v140 = vadd.f32 %v128, %v138
    %v141 = vadd.f32 %v131, %v139
    %v142 = vmul.f32 %v140, 0.7978846
    %v143 = vmul.f32 %v141, 0.7978846
    %v144 = vtanh.pop %v142
    %v145 = vtanh.pop %v143
    %v146 = vadd.f32 %v144, 1.0
    %v147 = vadd.f32 %v145, 1.0
    %v148 = vmul.f32 %v146, 0.5
    %v149 = vmul.f32 %v147, 0.5
    %v150 = vmul.f32 %v128, %v148
    %v151 = vmul.f32 %v131, %v149
    %v152 = vpack.c.bf16 %v151, %v150
    %v153 = vld [vmem:[#allocation7] sm:$0xf]
    %v154 = vld [vmem:[#allocation7 + $0x4] sm:$0xf]
    %v155 = vld [vmem:[#allocation7 + $0x8] sm:$0xf]
    %v156 = vld [vmem:[#allocation7 + $0xc] sm:$0xf]
    %v157 = vld [vmem:[%s4] sm:$0x1]
    %v159 = vlaneseq
    %v160 = vshrl.u32 %v159, 7
    %v161 = vsub.s32 0, %v160
    %v162 = vrot.slane %v157, %v161
    %v168 = vunpack.c.l.b16 %v153
    %v169 = vunpack.c.l.b16 %v154
    %v170 = vunpack.c.l.b16 %v155
    %v171 = vunpack.c.l.b16 %v156
    %v172 = vpack.c.b16 %v169, %v168
    %v173 = vpack.c.b16 %v171, %v170
    %v177 = vsel %vm89, %v152, 0
    %179 = vmatprep.subr.bf16.mxu0 0
    %180 = vmatpush1.bf16.msra.mxu0 0
    %181 = vmatprep.subr.bf16.mxu0 0
    %182 = vmatpush1.bf16.msra.mxu0 0
    %183 = vmatprep.subr.bf16.mxu0 0
    %184 = vmatpush1.bf16.msra.mxu0 0
    %185 = vmatprep.subr.bf16.mxu0 0
    %186 = vmatpush1.bf16.msra.mxu0 0
    %187 = vmatprep.subr.bf16.mxu0 0
    %188 = vmatpush1.bf16.msra.mxu0 0
    %189 = vmatprep.subr.bf16.mxu0 0
    %190 = vmatpush1.bf16.msra.mxu0 0
    %191 = vmatprep.subr.bf16.mxu0 0
    %192 = vmatpush1.bf16.msra.mxu0 %v173
    %193 = vmatprep.subr.bf16.mxu0 0
    %194 = vmatpush1.bf16.msra.mxu0 %v172
    %195 = vmatprep.subr.bf16.mxu0 0
    %196 = vmatpush2.bf16.msra.mxu0 0
    %197 = vmatprep.subr.bf16.mxu0 0
    %198 = vmatpush2.bf16.msra.mxu0 0
    %199 = vmatprep.subr.bf16.mxu0 0
    %200 = vmatpush2.bf16.msra.mxu0 0
    %201 = vmatprep.subr.bf16.mxu0 0
    %202 = vmatpush2.bf16.msra.mxu0 0
    %203 = vmatprep.subr.bf16.mxu0 0
    %204 = vmatpush2.bf16.msra.mxu0 0
    %205 = vmatprep.subr.bf16.mxu0 0
    %206 = vmatpush2.bf16.msra.mxu0 0
    %207 = vmatprep.subr.bf16.mxu0 0
    %208 = vmatpush2.bf16.msra.mxu0 0
    %209 = vmatprep.subr.bf16.mxu0 0
    %210 = vmatpush2.bf16.msra.mxu0 0
    %211 = vmatprep.mubr.bf16.mxu0 0
    %212 = vmatmul.mubr.bf16.gmra.mxu0 %v177
    %v213 = vpop.f32.mrf.mxu0
    %v214 = vadd.f32 %v162, %v213
    %v215 = vpop.f32.mrf.mxu0
    %v216 = vpop.f32.mrf.mxu0
    %v217 = vadd.f32 %v162, %v216
    %v218 = vpop.f32.mrf.mxu0
    %219 = vdwg.mxu0
    %220 = vst [vmem:[#allocation8] sm:$0xff] %v214
    %221 = vst [vmem:[#allocation8 + $0x8] sm:$0xff] %v217
    // Predicated region
    $region34: #{tpu_custom_call.1} parent=1 // pred_check
      _
    $region35: #{tpu_custom_call.1} parent=1 // pred_check_branch
      %223 = sbr.rel (0) target = $region37
    $region36: #{tpu_custom_call.1} parent=1 // pred_region
      %s225 = ssub.s32 256, 256
      %226 = vsyncadd [#allocation4], %s225
      %s227 = sshll.u32 [#allocation8], 4
      %s228 = int_to_ptr.vmem [resolvable:$true] %s227
      %233 = dma.vmem_to_hbm [thread:$0]  %s228, 256, %s5, [#allocation4], 128, 128, 8
    $region37: #{tpu_custom_call.1} parent=1 // pred_fallthru
      _
    // Predicated region
    $region38: #{tpu_custom_call.1} parent=1 // pred_check
      _
    $region39: #{tpu_custom_call.1} parent=1 // pred_check_branch
      %235 = sbr.rel (0) target = $region41
    $region40: #{tpu_custom_call.1} parent=1 // pred_region
      %236 = dma.done [#allocation4], 256
    $region41: #{tpu_custom_call.1} parent=1 // pred_fallthru
      _
    %237 = vsyncpa [#allocation3], 1
    %238 = vsyncpa [#allocation6], 1
    %239 = vsyncpa [#allocation4], 1

// kernel: tpu_custom_call.1
$region0: #{tpu_custom_call.1}
  #allocation0 [shape = 'u32[]', space=smem, size = 0x4, offset = 0x4, fixed_abs, tag = 'smem constant byte address 0x4 - core index']
  #allocation1 [shape = 'u32[144,128]{1,0:T(1,128)}', space=vmem, size = 0x12000, scoped, tag = 'internal scratch']
  %s0 = inlined_call_operand.hbm [shape: f32[16,32], index: 0, kind: input, shape index: {}]
  %s1 = inlined_call_operand.hbm [shape: bf16[32,32], index: 1, kind: input, shape index: {}]
  %s2 = inlined_call_operand.vmem [shape: f32[1,32], index: 2, kind: input, shape index: {}]
  %s3 = inlined_call_operand.hbm [shape: bf16[32,128], index: 3, kind: input, shape index: {}]
  %s4 = inlined_call_operand.vmem [shape: f32[1,128], index: 4, kind: input, shape index: {}]
  %s5 = inlined_call_operand.hbm [shape: f32[16,128], index: 5, kind: output, shape index: {}]
  %s6 = sld [smem:[#allocation0]]
  $region42: #{tpu_custom_call.1} parent=0
    _
  %s8 = ssub.s32 1, %s6
  %s9 = scalar_select 0, %s8, %s6
  $region1: #{tpu_custom_call.1} parent=0
    #allocation2 [shape = 'u8[8192]{0}', space=vmem, size = 0x2000, scoped, tag = 'input window, operand 0, single buffered']
    #allocation3 [shape = 's32[1]{0}', space=sflag, size = 0x4, scoped, tag = 'scoped memory for tpu_custom_call.1']
    #allocation4 [shape = 's32[1]{0}', space=sflag, size = 0x4, scoped, tag = 'scoped memory for tpu_custom_call.1']
    #allocation5 [shape = 'u8[8192]{0}', space=vmem, size = 0x2000, scoped, tag = 'input window, operand 1, single buffered']
    #allocation6 [shape = 's32[1]{0}', space=sflag, size = 0x4, scoped, tag = 'scoped memory for tpu_custom_call.1']
    #allocation7 [shape = 'u8[8192]{0}', space=vmem, size = 0x2000, scoped, tag = 'input window, operand 3, single buffered']
    #allocation8 [shape = 'u8[8192]{0}', space=vmem, size = 0x2000, scoped, tag = 'output window, operand 0, single buffered']
    %10 = vsyncpa [#allocation3], 0
    %11 = vsyncpa [#allocation6], 0
    %12 = vsyncpa [#allocation4], 0
    // Predicated region
    $region2: #{tpu_custom_call.1} parent=1 // pred_check
      _
    $region3: #{tpu_custom_call.1} parent=1 // pred_check_branch
      %14 = sbr.rel (0) target = $region5
    $region4: #{tpu_custom_call.1} parent=1 // pred_region
      %s16 = ssub.s32 256, 256
      %17 = vsyncadd [#allocation3], %s16
      %s18 = sshll.u32 [#allocation2], 4
      %s19 = int_to_ptr.vmem [resolvable:$true] %s18
      %24 = dma.hbm_to_vmem [thread:$0]  %s0, 256, %s19, [#allocation3], 128, 128, 8
    $region5: #{tpu_custom_call.1} parent=1 // pred_fallthru
      _
    // Predicated region
    $region6: #{tpu_custom_call.1} parent=1 // pred_check
      _
    $region7: #{tpu_custom_call.1} parent=1 // pred_check_branch
      %26 = sbr.rel (0) target = $region9
    $region8: #{tpu_custom_call.1} parent=1 // pred_region
      %s28 = ssub.s32 256, 256
      %29 = vsyncadd [#allocation6], %s28
      %s30 = sshll.u32 [#allocation5], 4
      %s31 = int_to_ptr.vmem [resolvable:$true] %s30
      %36 = dma.hbm_to_vmem [thread:$0]  %s1, 256, %s31, [#allocation6], 64, 64, 4
    $region9: #{tpu_custom_call.1} parent=1 // pred_fallthru
      _
    // Predicated region
    $region10: #{tpu_custom_call.1} parent=1 // pred_check
      _
    $region11: #{tpu_custom_call.1} parent=1 // pred_check_branch
      %38 = sbr.rel (0) target = $region13
    $region12: #{tpu_custom_call.1} parent=1 // pred_region
      _
    $region13: #{tpu_custom_call.1} parent=1 // pred_fallthru
      _
    // Predicated region
    $region14: #{tpu_custom_call.1} parent=1 // pred_check
      _
    $region15: #{tpu_custom_call.1} parent=1 // pred_check_branch
      %40 = sbr.rel (0) target = $region17
    $region16: #{tpu_custom_call.1} parent=1 // pred_region
      %s42 = ssub.s32 256, 256
      %43 = vsyncadd [#allocation6], %s42
      %s44 = sshll.u32 [#allocation7], 4
      %s45 = int_to_ptr.vmem [resolvable:$true] %s44
      %50 = dma.hbm_to_vmem [thread:$0]  %s3, 256, %s45, [#allocation6], 64, 64, 4
    $region17: #{tpu_custom_call.1} parent=1 // pred_fallthru
      _
    // Predicated region
    $region18: #{tpu_custom_call.1} parent=1 // pred_check
      _
    $region19: #{tpu_custom_call.1} parent=1 // pred_check_branch
      %52 = sbr.rel (0) target = $region21
    $region20: #{tpu_custom_call.1} parent=1 // pred_region
      _
    $region21: #{tpu_custom_call.1} parent=1 // pred_fallthru
      _
    // Predicated region
    $region22: #{tpu_custom_call.1} parent=1 // pred_check
      _
    $region23: #{tpu_custom_call.1} parent=1 // pred_check_branch
      %54 = sbr.rel (0) target = $region25
    $region24: #{tpu_custom_call.1} parent=1 // pred_region
      %55 = dma.done [#allocation3], 256
    $region25: #{tpu_custom_call.1} parent=1 // pred_fallthru
      _
    // Predicated region
    $region26: #{tpu_custom_call.1} parent=1 // pred_check
      _
    $region27: #{tpu_custom_call.1} parent=1 // pred_check_branch
      %57 = sbr.rel (0) target = $region29
    $region28: #{tpu_custom_call.1} parent=1 // pred_region
      %58 = dma.done [#allocation6], 256
    $region29: #{tpu_custom_call.1} parent=1 // pred_fallthru
      _
    // Predicated region
    $region30: #{tpu_custom_call.1} parent=1 // pred_check
      _
    $region31: #{tpu_custom_call.1} parent=1 // pred_check_branch
      %60 = sbr.rel (0) target = $region33
    $region32: #{tpu_custom_call.1} parent=1 // pred_region
      %61 = dma.done [#allocation6], 256
    $region33: #{tpu_custom_call.1} parent=1 // pred_fallthru
      _
    %v63 = vld [vmem:[#allocation2] sm:$0xff]
    %v64 = vld [vmem:[#allocation2 + $0x8] sm:$0xff]
    %v65 = vpack.c.bf16 %v64, %v63
    %v66 = vld [vmem:[#allocation5] sm:$0xf]
    %v67 = vld [vmem:[#allocation5 + $0x4] sm:$0xf]
    %v68 = vld [vmem:[#allocation5 + $0x8] sm:$0xf]
    %v69 = vld [vmem:[#allocation5 + $0xc] sm:$0xf]
    %v70 = vld [vmem:[%s2] sm:$0x1]
    %v72 = vlaneseq
    %v73 = vshrl.u32 %v72, 7
    %v74 = vsub.s32 0, %v73
    %v75 = vrot.slane %v70, %v74
    %v81 = vunpack.c.l.b16 %v66
    %v82 = vunpack.c.l.b16 %v67
    %v83 = vunpack.c.l.b16 %v68
    %v84 = vunpack.c.l.b16 %v69
    %v85 = vpack.c.b16 %v82, %v81
    %v86 = vpack.c.b16 %v84, %v83
    %vm89 = vcmask 261120
    %v91 = vsel %vm89, %v65, 0
    %93 = vmatprep.subr.bf16.mxu0 0
    %94 = vmatpush1.bf16.msra.mxu0 0
    %95 = vmatprep.subr.bf16.mxu0 0
    %96 = vmatpush1.bf16.msra.mxu0 0
    %97 = vmatprep.subr.bf16.mxu0 0
    %98 = vmatpush1.bf16.msra.mxu0 0
    %99 = vmatprep.subr.bf16.mxu0 0
    %100 = vmatpush1.bf16.msra.mxu0 0
    %101 = vmatprep.subr.bf16.mxu0 0
    %102 = vmatpush1.bf16.msra.mxu0 0
    %103 = vmatprep.subr.bf16.mxu0 0
    %104 = vmatpush1.bf16.msra.mxu0 0
    %105 = vmatprep.subr.bf16.mxu0 0
    %106 = vmatpush1.bf16.msra.mxu0 %v86
    %107 = vmatprep.subr.bf16.mxu0 0
    %108 = vmatpush1.bf16.msra.mxu0 %v85
    %109 = vmatprep.subr.bf16.mxu0 0
    %110 = vmatpush2.bf16.msra.mxu0 0
    %111 = vmatprep.subr.bf16.mxu0 0
    %112 = vmatpush2.bf16.msra.mxu0 0
    %113 = vmatprep.subr.bf16.mxu0 0
    %114 = vmatpush2.bf16.msra.mxu0 0
    %115 = vmatprep.subr.bf16.mxu0 0
    %116 = vmatpush2.bf16.msra.mxu0 0
    %117 = vmatprep.subr.bf16.mxu0 0
    %118 = vmatpush2.bf16.msra.mxu0 0
    %119 = vmatprep.subr.bf16.mxu0 0
    %120 = vmatpush2.bf16.msra.mxu0 0
    %121 = vmatprep.subr.bf16.mxu0 0
    %122 = vmatpush2.bf16.msra.mxu0 0
    %123 = vmatprep.subr.bf16.mxu0 0
    %124 = vmatpush2.bf16.msra.mxu0 0
    %125 = vmatprep.mubr.bf16.mxu0 0
    %126 = vmatmul.mubr.bf16.gmra.mxu0 %v91
    %v127 = vpop.f32.mrf.mxu0
    %v128 = vadd.f32 %v75, %v127
    %v129 = vpop.f32.mrf.mxu0
    %v130 = vpop.f32.mrf.mxu0
    %v131 = vadd.f32 %v75, %v130
    %v132 = vpop.f32.mrf.mxu0
    %133 = vdwg.mxu0
    %v134 = vmul.f32 %v128, %v128
    %v135 = vmul.f32 %v131, %v131
    %v136 = vmul.f32 %v128, %v134
    %v137 = vmul.f32 %v131, %v135
    %v138 = vmul.f32 %v136, 0.044715
    %v139 = vmul.f32 %v137, 0.044715
    %v140 = vadd.f32 %v128, %v138
    %v141 = vadd.f32 %v131, %v139
    %v142 = vmul.f32 %v140, 0.7978846
    %v143 = vmul.f32 %v141, 0.7978846
    %v144 = vtanh.pop %v142
    %v145 = vtanh.pop %v143
    %v146 = vadd.f32 %v144, 1.0
    %v147 = vadd.f32 %v145, 1.0
    %v148 = vmul.f32 %v146, 0.5
    %v149 = vmul.f32 %v147, 0.5
    %v150 = vmul.f32 %v128, %v148
    %v151 = vmul.f32 %v131, %v149
    %v152 = vpack.c.bf16 %v151, %v150
    %v153 = vld [vmem:[#allocation7] sm:$0xf]
    %v154 = vld [vmem:[#allocation7 + $0x4] sm:$0xf]
    %v155 = vld [vmem:[#allocation7 + $0x8] sm:$0xf]
    %v156 = vld [vmem:[#allocation7 + $0xc] sm:$0xf]
    %v157 = vld [vmem:[%s4] sm:$0x1]
    %v159 = vlaneseq
    %v160 = vshrl.u32 %v159, 7
    %v161 = vsub.s32 0, %v160
    %v162 = vrot.slane %v157, %v161
    %v168 = vunpack.c.l.b16 %v153
    %v169 = vunpack.c.l.b16 %v154
    %v170 = vunpack.c.l.b16 %v155
    %v171 = vunpack.c.l.b16 %v156
    %v172 = vpack.c.b16 %v169, %v168
    %v173 = vpack.c.b16 %v171, %v170
    %v177 = vsel %vm89, %v152, 0
    %179 = vmatprep.subr.bf16.mxu0 0
    %180 = vmatpush1.bf16.msra.mxu0 0
    %181 = vmatprep.subr.bf16.mxu0 0
    %182 = vmatpush1.bf16.msra.mxu0 0
    %183 = vmatprep.subr.bf16.mxu0 0
    %184 = vmatpush1.bf16.msra.mxu0 0
    %185 = vmatprep.subr.bf16.mxu0 0
    %186 = vmatpush1.bf16.msra.mxu0 0
    %187 = vmatprep.subr.bf16.mxu0 0
    %188 = vmatpush1.bf16.msra.mxu0 0
    %189 = vmatprep.subr.bf16.mxu0 0
    %190 = vmatpush1.bf16.msra.mxu0 0
    %191 = vmatprep.subr.bf16.mxu0 0
    %192 = vmatpush1.bf16.msra.mxu0 %v173
    %193 = vmatprep.subr.bf16.mxu0 0
    %194 = vmatpush1.bf16.msra.mxu0 %v172
    %195 = vmatprep.subr.bf16.mxu0 0
    %196 = vmatpush2.bf16.msra.mxu0 0
    %197 = vmatprep.subr.bf16.mxu0 0
    %198 = vmatpush2.bf16.msra.mxu0 0
    %199 = vmatprep.subr.bf16.mxu0 0
    %200 = vmatpush2.bf16.msra.mxu0 0
    %201 = vmatprep.subr.bf16.mxu0 0
    %202 = vmatpush2.bf16.msra.mxu0 0
    %203 = vmatprep.subr.bf16.mxu0 0
    %204 = vmatpush2.bf16.msra.mxu0 0
    %205 = vmatprep.subr.bf16.mxu0 0
    %206 = vmatpush2.bf16.msra.mxu0 0
    %207 = vmatprep.subr.bf16.mxu0 0
    %208 = vmatpush2.bf16.msra.mxu0 0
    %209 = vmatprep.subr.bf16.mxu0 0
    %210 = vmatpush2.bf16.msra.mxu0 0
    %211 = vmatprep.mubr.bf16.mxu0 0
    %212 = vmatmul.mubr.bf16.gmra.mxu0 %v177
    %v213 = vpop.f32.mrf.mxu0
    %v214 = vadd.f32 %v162, %v213
    %v215 = vpop.f32.mrf.mxu0
    %v216 = vpop.f32.mrf.mxu0
    %v217 = vadd.f32 %v162, %v216
    %v218 = vpop.f32.mrf.mxu0
    %219 = vdwg.mxu0
    %220 = vst [vmem:[#allocation8] sm:$0xff] %v214
    %221 = vst [vmem:[#allocation8 + $0x8] sm:$0xff] %v217
    // Predicated region
    $region34: #{tpu_custom_call.1} parent=1 // pred_check
      _
    $region35: #{tpu_custom_call.1} parent=1 // pred_check_branch
      %223 = sbr.rel (0) target = $region37
    $region36: #{tpu_custom_call.1} parent=1 // pred_region
      %s225 = ssub.s32 256, 256
      %226 = vsyncadd [#allocation4], %s225
      %s227 = sshll.u32 [#allocation8], 4
      %s228 = int_to_ptr.vmem [resolvable:$true] %s227
      %233 = dma.vmem_to_hbm [thread:$0]  %s228, 256, %s5, [#allocation4], 128, 128, 8
    $region37: #{tpu_custom_call.1} parent=1 // pred_fallthru
      _
    // Predicated region
    $region38: #{tpu_custom_call.1} parent=1 // pred_check
      _
    $region39: #{tpu_custom_call.1} parent=1 // pred_check_branch
      %235 = sbr.rel (0) target = $region41
    $region40: #{tpu_custom_call.1} parent=1 // pred_region
      %236 = dma.done [#allocation4], 256
    $region41: #{tpu_custom_call.1} parent=1 // pred_fallthru
      _
    %237 = vsyncpa [#allocation3], 1
    %238 = vsyncpa [#allocation6], 1
    %239 = vsyncpa [#allocation4], 1

</llo_original>
